<compile_context>
chip_gen: v7x
topology: tpu7x:2x2x1
jax: 0.10.0
libtpu: 0.0.40
codegen_flags: <defaults>
</compile_context>

<pallas_src>
import functools
import math

import jax
import jax.numpy as jnp
from jax.experimental import pallas as pl
from jax.experimental.pallas import tpu as pltpu


# ----------------------------------------------------------------------------
# Kernel
# ----------------------------------------------------------------------------
def _adamix_kernel(ids_ref, *refs, scale, eps, has_residual, add_residual):
    del ids_ref  # expert selection happens in the BlockSpec index_maps
    if has_residual:
        (x_ref, res_ref, g_ref, b_ref, wd_ref, bd_ref, wu_ref, bu_ref,
         out_ref) = refs
    else:
        (x_ref, g_ref, b_ref, wd_ref, bd_ref, wu_ref, bu_ref, out_ref) = refs
        res_ref = None

    xf = x_ref[...].astype(jnp.float32)
    d_inv = 1.0 / xf.shape[-1]

    # --- LayerNorm ('in'): one stats pass, f32 statistics, fused apply ---
    mean = jnp.sum(xf, axis=-1, keepdims=True) * d_inv
    msq = jnp.sum(xf * xf, axis=-1, keepdims=True) * d_inv
    var = jnp.maximum(msq - mean * mean, 0.0)
    inv_std = jax.lax.rsqrt(var + eps)
    ga = g_ref[...].astype(jnp.float32) * inv_std              # (tm, D)
    shift = b_ref[...].astype(jnp.float32) - mean * ga         # (tm, D)
    h = xf * ga + shift
    del xf  # don't keep the f32 token tile live across the matmuls

    # --- down projection + ReLU (MXU fed in weight dtype, f32 accumulate) ---
    down = jnp.dot(h.astype(wd_ref.dtype), wd_ref[...],
                   preferred_element_type=jnp.float32)
    down = jnp.maximum(down + bd_ref[...].astype(jnp.float32), 0.0)
    # TODO(synk): dropout p>0 would need pltpu.prng_* here; module default 0.0.

    # --- up projection, scale, residual add ---
    up = jnp.dot(down.astype(wu_ref.dtype), wu_ref[...],
                 preferred_element_type=jnp.float32)
    up = up + bu_ref[...].astype(jnp.float32)
    if scale != 1.0:                       # statically skipped when scale == 1
        up = up * scale
    if add_residual:
        res = res_ref[...] if has_residual else x_ref[...]   # re-read the tile
        up = up + res.astype(jnp.float32)
    out_ref[...] = up.astype(out_ref.dtype)


# ----------------------------------------------------------------------------
# Tiling helpers
# ----------------------------------------------------------------------------
def _round_up(x, m):
    return ((x + m - 1) // m) * m


def _vmem_budget_bytes():
    """Generation-aware scoped-VMEM budget (headroom left for the compiler)."""
    cap = 128 * 1024 * 1024
    try:
        cap = int(pltpu.get_tpu_info().vmem_capacity_bytes)
    except Exception:
        pass
    # 3/4 of physical, capped at 80 MiB (v7x: 64 MiB physical -> 48 MiB).
    return int(min(cap * 3 // 4, 80 * 1024 * 1024))


def _select_tm(n_tokens, d_model, bn_pad, x_dtype, w_dtype, budget_bytes,
               n_streams):
    """Largest 8-aligned token tile (<=512 rows) fitting the VMEM budget."""
    if n_tokens <= 8:
        return max(int(n_tokens), 1)
    xb = jnp.dtype(x_dtype).itemsize
    wb = jnp.dtype(w_dtype).itemsize
    # Resident weights/biases (worst case: double-buffered).
    weight_bytes = 2 * (2 * d_model * bn_pad * wb + (bn_pad + 3 * d_model) * wb)
    avail = max(budget_bytes - weight_bytes, 1 << 20)
    # Per token row: double-buffered input stream(s) + output stream, plus a
    # conservative ~5 live f32 D-vectors and the f32 bottleneck intermediate.
    per_row = 2 * (n_streams + 1) * d_model * xb + 4 * (5 * d_model + bn_pad)
    tm = min(int(avail // per_row), 512)   # 256-512 rows ~85% of HBM roofline
    if n_tokens >= 8 * 256:
        # Keep >=8 grid steps (>=4 per TensorCore on v7x) for DMA overlap,
        # without shrinking tiles below ~256 rows.
        tm = min(tm, pl.cdiv(n_tokens, 8))
    tm = min(tm, n_tokens)
    tm = max(8, (tm // 8) * 8)
    return tm


# ----------------------------------------------------------------------------
# Wrapper
# ----------------------------------------------------------------------------
def adamix_forward(x, ln_gamma, ln_beta, wd_t_all, bd_all, wu_t_all, bu_all,
                   expert_ids, *, scale=1.0, eps=1e-5, residual=None,
                   add_residual=True, weight_dtype=None, tm=None):
    """Adamix forward with kernel-side expert selection.

    x:          [B, S, D]
    wd_t_all:   [A, D, bn_pad]   stacked down_proj weights, pre-transposed
    bd_all:     [A, 1, bn_pad]
    wu_t_all:   [A, bn_pad, D]   stacked up_proj weights, pre-transposed
    bu_all:     [A, 1, D]
    expert_ids: [2] int32 device array (down_idx, up_idx), consumed via
                scalar prefetch (no host sync).
    scale must be a static Python float (it selects code at trace time).
    """
    B, S, D = x.shape
    N = B * S
    bn_pad = wd_t_all.shape[-1]
    has_residual = residual is not None

    if weight_dtype is not None:
        # e.g. jnp.bfloat16 on v7x (no native f32 MXU path); accumulation
        # stays f32 inside the kernel.
        wd_t_all = wd_t_all.astype(weight_dtype)
        wu_t_all = wu_t_all.astype(weight_dtype)

    budget = _vmem_budget_bytes()
    if tm is None:
        tm = _select_tm(N, D, bn_pad, x.dtype, wd_t_all.dtype, budget,
                        n_streams=2 if has_residual else 1)

    x2 = x.reshape(N, D)                          # metadata-only reshape
    r2 = residual.reshape(N, D) if has_residual else None
    g2 = ln_gamma.reshape(1, D)
    b2 = ln_beta.reshape(1, D)
    ids = expert_ids.astype(jnp.int32)

    kernel = functools.partial(_adamix_kernel, scale=float(scale),
                               eps=float(eps), has_residual=has_residual,
                               add_residual=add_residual)
    grid = (pl.cdiv(N, tm),)          # partial last tile -> masked stores

    def tok_spec():
        return pl.BlockSpec((tm, D), lambda i, e: (i, 0))

    def _run(single_buffer_weights):
        def wspec(shape, index_map):
            if single_buffer_weights:
                # Grid-invariant block: one buffer, copied once.
                return pl.BlockSpec(shape, index_map,
                                    pipeline_mode=pl.Buffered(1))
            return pl.BlockSpec(shape, index_map)

        in_specs = [tok_spec()]
        args = [x2]
        if has_residual:
            in_specs.append(tok_spec())
            args.append(r2)
        in_specs += [
            wspec((1, D), lambda i, e: (0, 0)),                        # gamma
            wspec((1, D), lambda i, e: (0, 0)),                        # beta
            wspec((None, D, bn_pad), lambda i, e: (e[0], 0, 0)),       # Wd^T
            wspec((None, 1, bn_pad), lambda i, e: (e[0], 0, 0)),       # bd
            wspec((None, bn_pad, D), lambda i, e: (e[1], 0, 0)),       # Wu^T
            wspec((None, 1, D), lambda i, e: (e[1], 0, 0)),            # bu
        ]
        args += [g2, b2, wd_t_all, bd_all, wu_t_all, bu_all]

        return pl.pallas_call(
            kernel,
            out_shape=jax.ShapeDtypeStruct((N, D), x.dtype),
            grid_spec=pltpu.PrefetchScalarGridSpec(
                num_scalar_prefetch=1,
                grid=grid,
                in_specs=in_specs,
                out_specs=pl.BlockSpec((tm, D), lambda i, e: (i, 0)),
            ),
            compiler_params=pltpu.CompilerParams(
                dimension_semantics=("parallel",),
                vmem_limit_bytes=budget),
        )(ids, *args)

    try:
        out = _run(True)
    except (TypeError, NotImplementedError, pltpu.LoweringException):
        # pl.Buffered(1) not supported for these blocks on this jax version:
        # fall back to default double-buffered weight blocks.  Genuine
        # failures (e.g. scoped-VMEM OOM) propagate instead of being retried.
        out = _run(False)

    return out.reshape(B, S, D)


# ----------------------------------------------------------------------------
# Parameter init (synthetic; mirrors the module's shapes, prepared once)
# ----------------------------------------------------------------------------
def make_adamix_params(key, d_model, bottleneck, num_of_adapters):
    """Stacked, pre-transposed, lane-padded adapter params (one-time prep).

    PyTorch 'lora' init zeros the up-proj (adapter output would be exactly 0),
    so the up-proj gets small nonzero values here to keep the kernel testable.
    Zero bottleneck padding is exact: ReLU(0+0)=0 and padded Wu rows are zero.
    """
    bn_pad = _round_up(bottleneck, 128)
    keys = jax.random.split(key, 2 * num_of_adapters)
    bound_d = math.sqrt(6.0 / d_model) / math.sqrt(1.0 + 5.0)
    wd = jnp.stack([jax.random.uniform(keys[i], (bottleneck, d_model),
                                       minval=-bound_d, maxval=bound_d,
                                       dtype=jnp.float32)
                    for i in range(num_of_adapters)])            # [A, bn, D]
    wu = jnp.stack([0.02 * jax.random.normal(keys[num_of_adapters + i],
                                             (d_model, bottleneck),
                                             dtype=jnp.float32)
                    for i in range(num_of_adapters)])            # [A, D, bn]
    wd_t = jnp.pad(jnp.transpose(wd, (0, 2, 1)),
                   ((0, 0), (0, 0), (0, bn_pad - bottleneck)))   # [A, D, bnp]
    wu_t = jnp.pad(jnp.transpose(wu, (0, 2, 1)),
                   ((0, 0), (0, bn_pad - bottleneck), (0, 0)))   # [A, bnp, D]
    bd = jnp.zeros((num_of_adapters, 1, bn_pad), jnp.float32)
    bu = jnp.zeros((num_of_adapters, 1, d_model), jnp.float32)
    ln_gamma = jnp.ones((d_model,), jnp.float32)
    ln_beta = jnp.zeros((d_model,), jnp.float32)
    return dict(wd_t=wd_t, bd=bd, wu_t=wu_t, bu=bu,
                ln_gamma=ln_gamma, ln_beta=ln_beta)


if __name__ == "__main__":
    d_model = 128
    bottleneck = 16
    num_of_adapters = 4
    B, S = 2, 16

    key = jax.random.PRNGKey(0)
    k_x, k_p, k_e = jax.random.split(key, 3)

    x = jax.random.normal(k_x, (B, S, d_model), dtype=jnp.float32)
    params = make_adamix_params(k_p, d_model, bottleneck, num_of_adapters)

    # _gengrate_expert_ids(): one (down_idx, up_idx) draw per forward, kept on
    # device and consumed via scalar prefetch (no host int() sync).
    expert_ids = jax.random.randint(k_e, (2,), 0, num_of_adapters,
                                    dtype=jnp.int32)

    out = adamix_forward(x, params["ln_gamma"], params["ln_beta"],
                         params["wd_t"], params["bd"],
                         params["wu_t"], params["bu"],
                         expert_ids, scale=1.0)
    jax.block_until_ready(out)

    # Pure-JAX reference (padding is exact, so padded weights can be used).
    wd_t = params["wd_t"][expert_ids[0]]
    bd = params["bd"][expert_ids[0]][0]
    wu_t = params["wu_t"][expert_ids[1]]
    bu = params["bu"][expert_ids[1]][0]

    def ref(x):
        mean = jnp.mean(x, axis=-1, keepdims=True)
        var = jnp.mean((x - mean) ** 2, axis=-1, keepdims=True)
        xn = (x - mean) / jnp.sqrt(var + 1e-5)
        xn = xn * params["ln_gamma"] + params["ln_beta"]
        dwn = jnp.maximum(xn @ wd_t + bd, 0.0)
        up = dwn @ wu_t + bu
        return up * 1.0 + x

    expected = ref(x)
    err = float(jnp.max(jnp.abs(out - expected)))
    assert jnp.allclose(out, expected, atol=1e-4, rtol=1e-4), err
    print("KERNEL_OK")
</pallas_src>

<mosaic_0001>
module attributes {stable_mosaic.version = 11 : i64} {
  func.func @_adamix_kernel(%arg0: i32, %arg1: memref<2xi32, #tpu.memory_space<smem>>, %arg2: memref<32x128xf32, #tpu.memory_space<vmem>>, %arg3: memref<1x128xf32, #tpu.memory_space<vmem>>, %arg4: memref<1x128xf32, #tpu.memory_space<vmem>>, %arg5: memref<1x128x128xf32, #tpu.memory_space<vmem>>, %arg6: memref<1x1x128xf32, #tpu.memory_space<vmem>>, %arg7: memref<1x128x128xf32, #tpu.memory_space<vmem>>, %arg8: memref<1x1x128xf32, #tpu.memory_space<vmem>>, %arg9: memref<32x128xf32, #tpu.memory_space<vmem>>) attributes {dimension_semantics = [#tpu.dimension_semantics<parallel>], iteration_bounds = array<i64: 1>, scalar_prefetch = 1 : i64, scratch_operands = 0 : i64, tpu.core_type = #tpu.core_type<tc>, window_params = [{transform_indices = @transform_0, window_bounds = array<i64: 32, 128>}, {pipeline_mode = #tpu.pipeline_mode<synchronous>, transform_indices = @transform_1, window_bounds = array<i64: 1, 128>}, {pipeline_mode = #tpu.pipeline_mode<synchronous>, transform_indices = @transform_2, window_bounds = array<i64: 1, 128>}, {pipeline_mode = #tpu.pipeline_mode<synchronous>, transform_indices = @transform_3, window_bounds = array<i64: 1, 128, 128>}, {pipeline_mode = #tpu.pipeline_mode<synchronous>, transform_indices = @transform_4, window_bounds = array<i64: 1, 1, 128>}, {pipeline_mode = #tpu.pipeline_mode<synchronous>, transform_indices = @transform_5, window_bounds = array<i64: 1, 128, 128>}, {pipeline_mode = #tpu.pipeline_mode<synchronous>, transform_indices = @transform_6, window_bounds = array<i64: 1, 1, 128>}, {transform_indices = @transform_7, window_bounds = array<i64: 32, 128>}]} {
    %c0 = arith.constant 0 : index
    %c0_0 = arith.constant 0 : index
    %0 = vector.load %arg2[%c0, %c0_0] : memref<32x128xf32, #tpu.memory_space<vmem>>, vector<32x128xf32>
    %cst = arith.constant dense<0.000000e+00> : vector<32xf32>
    %1 = vector.multi_reduction <add>, %0, %cst [1] : vector<32x128xf32> to vector<32xf32>
    %2 = vector.shape_cast %1 : vector<32xf32> to vector<32x1xf32>
    %cst_1 = arith.constant 7.812500e-03 : f32
    %3 = vector.broadcast %cst_1 : f32 to vector<32x1xf32>
    %4 = arith.mulf %2, %3 : vector<32x1xf32>
    %5 = arith.mulf %0, %0 : vector<32x128xf32>
    %cst_2 = arith.constant dense<0.000000e+00> : vector<32xf32>
    %6 = vector.multi_reduction <add>, %5, %cst_2 [1] : vector<32x128xf32> to vector<32xf32>
    %7 = vector.shape_cast %6 : vector<32xf32> to vector<32x1xf32>
    %cst_3 = arith.constant 7.812500e-03 : f32
    %8 = vector.broadcast %cst_3 : f32 to vector<32x1xf32>
    %9 = arith.mulf %7, %8 : vector<32x1xf32>
    %10 = arith.mulf %4, %4 : vector<32x1xf32>
    %11 = arith.subf %9, %10 : vector<32x1xf32>
    %cst_4 = arith.constant 0.000000e+00 : f32
    %12 = vector.broadcast %cst_4 : f32 to vector<32x1xf32>
    %13 = arith.maximumf %11, %12 : vector<32x1xf32>
    %cst_5 = arith.constant 9.99999974E-6 : f32
    %14 = vector.broadcast %cst_5 : f32 to vector<32x1xf32>
    %15 = arith.addf %13, %14 : vector<32x1xf32>
    %16 = math.rsqrt %15 : vector<32x1xf32>
    %c0_6 = arith.constant 0 : index
    %c0_7 = arith.constant 0 : index
    %17 = vector.load %arg3[%c0_6, %c0_7] : memref<1x128xf32, #tpu.memory_space<vmem>>, vector<1x128xf32>
    %18 = vector.broadcast %17 : vector<1x128xf32> to vector<32x128xf32>
    %19 = vector.broadcast %16 : vector<32x1xf32> to vector<32x128xf32>
    %20 = arith.mulf %18, %19 : vector<32x128xf32>
    %c0_8 = arith.constant 0 : index
    %c0_9 = arith.constant 0 : index
    %21 = vector.load %arg4[%c0_8, %c0_9] : memref<1x128xf32, #tpu.memory_space<vmem>>, vector<1x128xf32>
    %22 = vector.broadcast %4 : vector<32x1xf32> to vector<32x128xf32>
    %23 = arith.mulf %22, %20 : vector<32x128xf32>
    %24 = vector.broadcast %21 : vector<1x128xf32> to vector<32x128xf32>
    %25 = arith.subf %24, %23 : vector<32x128xf32>
    %26 = arith.mulf %0, %20 : vector<32x128xf32>
    %27 = arith.addf %26, %25 : vector<32x128xf32>
    %c0_10 = arith.constant 0 : index
    %c0_11 = arith.constant 0 : index
    %c0_12 = arith.constant 0 : index
    %28 = vector.load %arg5[%c0_10, %c0_11, %c0_12] : memref<1x128x128xf32, #tpu.memory_space<vmem>>, vector<1x128x128xf32>
    %29 = vector.shape_cast %28 : vector<1x128x128xf32> to vector<128x128xf32>
    %cst_13 = arith.constant dense<0.000000e+00> : vector<32x128xf32>
    %30 = tpu.matmul %27, %29, %cst_13 {dimension_numbers = #tpu.dot_dimension_numbers<[1], [0], [0], [1], [0, 0, 1, 1], [], []>} : vector<32x128xf32>, vector<128x128xf32>, vector<32x128xf32> -> vector<32x128xf32>
    %c0_14 = arith.constant 0 : index
    %c0_15 = arith.constant 0 : index
    %c0_16 = arith.constant 0 : index
    %31 = vector.load %arg6[%c0_14, %c0_15, %c0_16] : memref<1x1x128xf32, #tpu.memory_space<vmem>>, vector<1x1x128xf32>
    %32 = vector.shape_cast %31 : vector<1x1x128xf32> to vector<1x128xf32>
    %33 = vector.broadcast %32 : vector<1x128xf32> to vector<32x128xf32>
    %34 = arith.addf %30, %33 : vector<32x128xf32>
    %cst_17 = arith.constant 0.000000e+00 : f32
    %35 = vector.broadcast %cst_17 : f32 to vector<32x128xf32>
    %36 = arith.maximumf %34, %35 : vector<32x128xf32>
    %c0_18 = arith.constant 0 : index
    %c0_19 = arith.constant 0 : index
    %c0_20 = arith.constant 0 : index
    %37 = vector.load %arg7[%c0_18, %c0_19, %c0_20] : memref<1x128x128xf32, #tpu.memory_space<vmem>>, vector<1x128x128xf32>
    %38 = vector.shape_cast %37 : vector<1x128x128xf32> to vector<128x128xf32>
    %cst_21 = arith.constant dense<0.000000e+00> : vector<32x128xf32>
    %39 = tpu.matmul %36, %38, %cst_21 {dimension_numbers = #tpu.dot_dimension_numbers<[1], [0], [0], [1], [0, 0, 1, 1], [], []>} : vector<32x128xf32>, vector<128x128xf32>, vector<32x128xf32> -> vector<32x128xf32>
    %c0_22 = arith.constant 0 : index
    %c0_23 = arith.constant 0 : index
    %c0_24 = arith.constant 0 : index
    %40 = vector.load %arg8[%c0_22, %c0_23, %c0_24] : memref<1x1x128xf32, #tpu.memory_space<vmem>>, vector<1x1x128xf32>
    %41 = vector.shape_cast %40 : vector<1x1x128xf32> to vector<1x128xf32>
    %42 = vector.broadcast %41 : vector<1x128xf32> to vector<32x128xf32>
    %43 = arith.addf %39, %42 : vector<32x128xf32>
    %c0_25 = arith.constant 0 : index
    %c0_26 = arith.constant 0 : index
    %44 = vector.load %arg2[%c0_25, %c0_26] : memref<32x128xf32, #tpu.memory_space<vmem>>, vector<32x128xf32>
    %45 = arith.addf %43, %44 : vector<32x128xf32>
    %c0_27 = arith.constant 0 : index
    %c0_28 = arith.constant 0 : index
    %46 = vector.load %arg9[%c0_27, %c0_28] : memref<32x128xf32, #tpu.memory_space<vmem>>, vector<32x128xf32>
    tpu.vector_store %arg9[%c0_27, %c0_28], %45 {strides = array<i32>} : memref<32x128xf32, #tpu.memory_space<vmem>>, vector<32x128xf32>,
    return
  }
  func.func @transform_0(%arg0: i32, %arg1: memref<2xi32, #tpu.memory_space<smem>>) -> (i32, i32) {
    %c0_i32 = arith.constant 0 : i32
    %c0_i32_0 = arith.constant 0 : i32
    return %arg0, %c0_i32 : i32, i32
  }
  func.func @transform_1(%arg0: i32, %arg1: memref<2xi32, #tpu.memory_space<smem>>) -> (i32, i32) {
    %c0_i32 = arith.constant 0 : i32
    %c0_i32_0 = arith.constant 0 : i32
    %c0_i32_1 = arith.constant 0 : i32
    return %c0_i32, %c0_i32_0 : i32, i32
  }
  func.func @transform_2(%arg0: i32, %arg1: memref<2xi32, #tpu.memory_space<smem>>) -> (i32, i32) {
    %c0_i32 = arith.constant 0 : i32
    %c0_i32_0 = arith.constant 0 : i32
    %c0_i32_1 = arith.constant 0 : i32
    return %c0_i32, %c0_i32_0 : i32, i32
  }
  func.func @transform_3(%arg0: i32, %arg1: memref<2xi32, #tpu.memory_space<smem>>) -> (i32, i32, i32) {
    %c0 = arith.constant 0 : index
    %0 = memref.load %arg1[%c0] : memref<2xi32, #tpu.memory_space<smem>>
    %c0_i32 = arith.constant 0 : i32
    %c0_i32_0 = arith.constant 0 : i32
    %c0_i32_1 = arith.constant 0 : i32
    return %0, %c0_i32, %c0_i32_0 : i32, i32, i32
  }
  func.func @transform_4(%arg0: i32, %arg1: memref<2xi32, #tpu.memory_space<smem>>) -> (i32, i32, i32) {
    %c0 = arith.constant 0 : index
    %0 = memref.load %arg1[%c0] : memref<2xi32, #tpu.memory_space<smem>>
    %c0_i32 = arith.constant 0 : i32
    %c0_i32_0 = arith.constant 0 : i32
    %c0_i32_1 = arith.constant 0 : i32
    return %0, %c0_i32, %c0_i32_0 : i32, i32, i32
  }
  func.func @transform_5(%arg0: i32, %arg1: memref<2xi32, #tpu.memory_space<smem>>) -> (i32, i32, i32) {
    %c1 = arith.constant 1 : index
    %0 = memref.load %arg1[%c1] : memref<2xi32, #tpu.memory_space<smem>>
    %c0_i32 = arith.constant 0 : i32
    %c0_i32_0 = arith.constant 0 : i32
    %c0_i32_1 = arith.constant 0 : i32
    return %0, %c0_i32, %c0_i32_0 : i32, i32, i32
  }
  func.func @transform_6(%arg0: i32, %arg1: memref<2xi32, #tpu.memory_space<smem>>) -> (i32, i32, i32) {
    %c1 = arith.constant 1 : index
    %0 = memref.load %arg1[%c1] : memref<2xi32, #tpu.memory_space<smem>>
    %c0_i32 = arith.constant 0 : i32
    %c0_i32_0 = arith.constant 0 : i32
    %c0_i32_1 = arith.constant 0 : i32
    return %0, %c0_i32, %c0_i32_0 : i32, i32, i32
  }
  func.func @transform_7(%arg0: i32, %arg1: memref<2xi32, #tpu.memory_space<smem>>) -> (i32, i32) {
    %c0_i32 = arith.constant 0 : i32
    %c0_i32_0 = arith.constant 0 : i32
    return %arg0, %c0_i32 : i32, i32
  }
}

</mosaic_0001>

<llo_original>
// kernel: tpu_custom_call.1
$region0: #{tpu_custom_call.1}
  #allocation0 [shape = 'u32[]', space=smem, size = 0x4, offset = 0x4, fixed_abs, tag = 'smem constant byte address 0x4 - core index']
  #allocation1 [shape = 'u32[144,128]{1,0:T(1,128)}', space=vmem, size = 0x12000, scoped, tag = 'internal scratch']
  #allocation2 [shape = 's32[1]{0}', space=sflag, size = 0x4, scoped, tag = 'scoped memory for tpu_custom_call.1']
  #allocation3 [shape = 'u8[512]{0}', space=smem, size = 0x200, scoped, tag = 'prefetched SMEM operand 0']
  %s0 = inlined_call_operand.hbm [shape: s32[2], index: 0, kind: input, shape index: {}]
  %s1 = inlined_call_operand.hbm [shape: f32[32,128], index: 1, kind: input, shape index: {}]
  %s2 = inlined_call_operand.hbm [shape: f32[1,128], index: 2, kind: input, shape index: {}]
  %s3 = inlined_call_operand.hbm [shape: f32[1,128], index: 3, kind: input, shape index: {}]
  %s4 = inlined_call_operand.hbm [shape: f32[4,128,128], index: 4, kind: input, shape index: {}]
  %s5 = inlined_call_operand.hbm [shape: f32[4,1,128], index: 5, kind: input, shape index: {}]
  %s6 = inlined_call_operand.hbm [shape: f32[4,128,128], index: 6, kind: input, shape index: {}]
  %s7 = inlined_call_operand.hbm [shape: f32[4,1,128], index: 7, kind: input, shape index: {}]
  %s8 = inlined_call_operand.hbm [shape: f32[32,128], index: 8, kind: output, shape index: {}]
  %s9 = sld [smem:[#allocation0]]
  $region66: #{tpu_custom_call.1} parent=0
    _
  %s11 = ssub.s32 1, %s9
  %s12 = scalar_select 0, %s11, %s9
  %14 = dma.hbm_to_smem %s0, 16, [#allocation3], [#allocation2]
  %15 = dma.done [#allocation2], 16
  %16 = sfence
  $region1: #{tpu_custom_call.1} parent=0
    #allocation4 [shape = 'u8[16384]{0}', space=vmem, size = 0x4000, scoped, tag = 'input window, operand 1, single buffered']
    #allocation5 [shape = 's32[1]{0}', space=sflag, size = 0x4, scoped, tag = 'scoped memory for tpu_custom_call.1']
    #allocation6 [shape = 's32[1]{0}', space=sflag, size = 0x4, scoped, tag = 'scoped memory for tpu_custom_call.1']
    #allocation7 [shape = 'u8[512]{0}', space=vmem, size = 0x400, scoped, tag = 'input window, operand 2, single buffered']
    #allocation8 [shape = 's32[1]{0}', space=sflag, size = 0x4, scoped, tag = 'scoped memory for tpu_custom_call.1']
    #allocation9 [shape = 'u8[512]{0}', space=vmem, size = 0x400, scoped, tag = 'input window, operand 3, single buffered']
    #allocation10 [shape = 'u8[65536]{0}', space=vmem, size = 0x10000, scoped, tag = 'input window, operand 4, single buffered']
    #allocation11 [shape = 's32[1]{0}', space=sflag, size = 0x4, scoped, tag = 'scoped memory for tpu_custom_call.1']
    #allocation12 [shape = 'u8[512]{0}', space=vmem, size = 0x400, scoped, tag = 'input window, operand 5, single buffered']
    #allocation13 [shape = 'u8[65536]{0}', space=vmem, size = 0x10000, scoped, tag = 'input window, operand 6, single buffered']
    #allocation14 [shape = 's32[1]{0}', space=sflag, size = 0x4, scoped, tag = 'scoped memory for tpu_custom_call.1']
    #allocation15 [shape = 'u8[512]{0}', space=vmem, size = 0x400, scoped, tag = 'input window, operand 7, single buffered']
    #allocation16 [shape = 'u8[16384]{0}', space=vmem, size = 0x4000, scoped, tag = 'output window, operand 0, single buffered']
    %17 = vsyncpa [#allocation5], 0
    %18 = vsyncpa [#allocation8], 0
    %19 = vsyncpa [#allocation11], 0
    %20 = vsyncpa [#allocation14], 0
    %21 = vsyncpa [#allocation6], 0
    // Predicated region
    $region2: #{tpu_custom_call.1} parent=1 // pred_check
      _
    $region3: #{tpu_custom_call.1} parent=1 // pred_check_branch
      %23 = sbr.rel (0) target = $region5
    $region4: #{tpu_custom_call.1} parent=1 // pred_region
      %s25 = ssub.s32 512, 512
      %26 = vsyncadd [#allocation5], %s25
      %s27 = sshll.u32 [#allocation4], 4
      %s28 = int_to_ptr.vmem [resolvable:$true] %s27
      %33 = dma.hbm_to_vmem [thread:$0]  %s1, 512, %s28, [#allocation5], 128, 128, 8
    $region5: #{tpu_custom_call.1} parent=1 // pred_fallthru
      _
    // Predicated region
    $region6: #{tpu_custom_call.1} parent=1 // pred_check
      _
    $region7: #{tpu_custom_call.1} parent=1 // pred_check_branch
      %35 = sbr.rel (0) target = $region9
    $region8: #{tpu_custom_call.1} parent=1 // pred_region
      %s37 = ssub.s32 16, 16
      %38 = vsyncadd [#allocation8], %s37
      %s40 = sshll.u32 [#allocation7], 4
      %s41 = int_to_ptr.vmem [resolvable:$true] %s40
      %43 = dma.hbm_to_vmem [thread:$0]  %s2, 16, %s41, [#allocation8]
    $region9: #{tpu_custom_call.1} parent=1 // pred_fallthru
      _
    // Predicated region
    $region10: #{tpu_custom_call.1} parent=1 // pred_check
      _
    $region11: #{tpu_custom_call.1} parent=1 // pred_check_branch
      %45 = sbr.rel (0) target = $region13
    $region12: #{tpu_custom_call.1} parent=1 // pred_region
      %s47 = ssub.s32 16, 16
      %48 = vsyncadd [#allocation8], %s47
      %s50 = sshll.u32 [#allocation9], 4
      %s51 = int_to_ptr.vmem [resolvable:$true] %s50
      %53 = dma.hbm_to_vmem [thread:$0]  %s3, 16, %s51, [#allocation8]
    $region13: #{tpu_custom_call.1} parent=1 // pred_fallthru
      _
    // Predicated region
    $region14: #{tpu_custom_call.1} parent=1 // pred_check
      _
    $region15: #{tpu_custom_call.1} parent=1 // pred_check_branch
      %55 = sbr.rel (0) target = $region17
    $region16: #{tpu_custom_call.1} parent=1 // pred_region
      %s56 = sld [smem:[#allocation3]]
      %s58 = ssub.s32 2048, 2048
      %59 = vsyncadd [#allocation11], %s58
      %s60 = smul.addr %s56, 16
      %s61 = smul.addr %s60, 128
      %s62 = scalar_lea.hbm %s4, %s61
      %s63 = sshll.u32 [#allocation10], 4
      %s64 = int_to_ptr.vmem [resolvable:$true] %s63
      %69 = dma.hbm_to_vmem [thread:$0]  %s62, 2048, %s64, [#allocation11], 128, 128, 8
    $region17: #{tpu_custom_call.1} parent=1 // pred_fallthru
      _
    // Predicated region
    $region18: #{tpu_custom_call.1} parent=1 // pred_check
      _
    $region19: #{tpu_custom_call.1} parent=1 // pred_check_branch
      %71 = sbr.rel (0) target = $region21
    $region20: #{tpu_custom_call.1} parent=1 // pred_region
      %s72 = sld [smem:[#allocation3]]
      %s74 = ssub.s32 16, 16
      %75 = vsyncadd [#allocation11], %s74
      %s76 = smul.addr %s72, 16
      %s77 = scalar_lea.hbm %s5, %s76
      %s79 = sshll.u32 [#allocation12], 4
      %s80 = int_to_ptr.vmem [resolvable:$true] %s79
      %82 = dma.hbm_to_vmem [thread:$0]  %s77, 16, %s80, [#allocation11]
    $region21: #{tpu_custom_call.1} parent=1 // pred_fallthru
      _
    // Predicated region
    $region22: #{tpu_custom_call.1} parent=1 // pred_check
      _
    $region23: #{tpu_custom_call.1} parent=1 // pred_check_branch
      %84 = sbr.rel (0) target = $region25
    $region24: #{tpu_custom_call.1} parent=1 // pred_region
      %s85 = sld [smem:[#allocation3 + $0x1]]
      %s87 = ssub.s32 2048, 2048
      %88 = vsyncadd [#allocation14], %s87
      %s89 = smul.addr %s85, 16
      %s90 = smul.addr %s89, 128
      %s91 = scalar_lea.hbm %s6, %s90
      %s92 = sshll.u32 [#allocation13], 4
      %s93 = int_to_ptr.vmem [resolvable:$true] %s92
      %98 = dma.hbm_to_vmem [thread:$0]  %s91, 2048, %s93, [#allocation14], 128, 128, 8
    $region25: #{tpu_custom_call.1} parent=1 // pred_fallthru
      _
    // Predicated region
    $region26: #{tpu_custom_call.1} parent=1 // pred_check
      _
    $region27: #{tpu_custom_call.1} parent=1 // pred_check_branch
      %100 = sbr.rel (0) target = $region29
    $region28: #{tpu_custom_call.1} parent=1 // pred_region
      %s101 = sld [smem:[#allocation3 + $0x1]]
      %s103 = ssub.s32 16, 16
      %104 = vsyncadd [#allocation14], %s103
      %s105 = smul.addr %s101, 16
      %s106 = scalar_lea.hbm %s7, %s105
      %s108 = sshll.u32 [#allocation15], 4
      %s109 = int_to_ptr.vmem [resolvable:$true] %s108
      %111 = dma.hbm_to_vmem [thread:$0]  %s106, 16, %s109, [#allocation14]
    $region29: #{tpu_custom_call.1} parent=1 // pred_fallthru
      _
    // Predicated region
    $region30: #{tpu_custom_call.1} parent=1 // pred_check
      _
    $region31: #{tpu_custom_call.1} parent=1 // pred_check_branch
      %113 = sbr.rel (0) target = $region33
    $region32: #{tpu_custom_call.1} parent=1 // pred_region
      %114 = dma.done [#allocation5], 512
    $region33: #{tpu_custom_call.1} parent=1 // pred_fallthru
      _
    // Predicated region
    $region34: #{tpu_custom_call.1} parent=1 // pred_check
      _
    $region35: #{tpu_custom_call.1} parent=1 // pred_check_branch
      %116 = sbr.rel (0) target = $region37
    $region36: #{tpu_custom_call.1} parent=1 // pred_region
      %117 = dma.done [#allocation8], 16
    $region37: #{tpu_custom_call.1} parent=1 // pred_fallthru
      _
    // Predicated region
    $region38: #{tpu_custom_call.1} parent=1 // pred_check
      _
    $region39: #{tpu_custom_call.1} parent=1 // pred_check_branch
      %119 = sbr.rel (0) target = $region41
    $region40: #{tpu_custom_call.1} parent=1 // pred_region
      %120 = dma.done [#allocation8], 16
    $region41: #{tpu_custom_call.1} parent=1 // pred_fallthru
      _
    // Predicated region
    $region42: #{tpu_custom_call.1} parent=1 // pred_check
      _
    $region43: #{tpu_custom_call.1} parent=1 // pred_check_branch
      %122 = sbr.rel (0) target = $region45
    $region44: #{tpu_custom_call.1} parent=1 // pred_region
      %123 = dma.done [#allocation11], 2048
    $region45: #{tpu_custom_call.1} parent=1 // pred_fallthru
      _
    // Predicated region
    $region46: #{tpu_custom_call.1} parent=1 // pred_check
      _
    $region47: #{tpu_custom_call.1} parent=1 // pred_check_branch
      %125 = sbr.rel (0) target = $region49
    $region48: #{tpu_custom_call.1} parent=1 // pred_region
      %126 = dma.done [#allocation11], 16
    $region49: #{tpu_custom_call.1} parent=1 // pred_fallthru
      _
    // Predicated region
    $region50: #{tpu_custom_call.1} parent=1 // pred_check
      _
    $region51: #{tpu_custom_call.1} parent=1 // pred_check_branch
      %128 = sbr.rel (0) target = $region53
    $region52: #{tpu_custom_call.1} parent=1 // pred_region
      %129 = dma.done [#allocation14], 2048
    $region53: #{tpu_custom_call.1} parent=1 // pred_fallthru
      _
    // Predicated region
    $region54: #{tpu_custom_call.1} parent=1 // pred_check
      _
    $region55: #{tpu_custom_call.1} parent=1 // pred_check_branch
      %131 = sbr.rel (0) target = $region57
    $region56: #{tpu_custom_call.1} parent=1 // pred_region
      %132 = dma.done [#allocation14], 16
    $region57: #{tpu_custom_call.1} parent=1 // pred_fallthru
      _
    %s133 = sld [smem:[#allocation3]]
    %s134 = sld [smem:[#allocation3]]
    %s135 = sld [smem:[#allocation3 + $0x1]]
    %s136 = sld [smem:[#allocation3 + $0x1]]
    %v137 = vld [vmem:[#allocation4] sm:$0xff]
    %v138 = vld [vmem:[#allocation4 + $0x8] sm:$0xff]
    %v139 = vld [vmem:[#allocation4 + $0x10] sm:$0xff]
    %v140 = vld [vmem:[#allocation4 + $0x18] sm:$0xff]
    %141 = vadd.xlane.f32.xlu0 %v137
    %v142 = vpop.xlane.xlu0 %141
    %143 = vadd.xlane.f32.xlu0 %v138
    %v144 = vpop.xlane.xlu0 %143
    %145 = vadd.xlane.f32.xlu0 %v139
    %v146 = vpop.xlane.xlu0 %145
    %147 = vadd.xlane.f32.xlu0 %v140
    %v148 = vpop.xlane.xlu0 %147
    %v149 = vmul.f32 %v142, 0.0078125
    %v150 = vmul.f32 %v144, 0.0078125
    %v151 = vmul.f32 %v146, 0.0078125
    %v152 = vmul.f32 %v148, 0.0078125
    %v153 = vmul.f32 %v137, %v137
    %v154 = vmul.f32 %v138, %v138
    %v155 = vmul.f32 %v139, %v139
    %v156 = vmul.f32 %v140, %v140
    %157 = vadd.xlane.f32.xlu0 %v153
    %v158 = vpop.xlane.xlu0 %157
    %159 = vadd.xlane.f32.xlu0 %v154
    %v160 = vpop.xlane.xlu0 %159
    %161 = vadd.xlane.f32.xlu0 %v155
    %v162 = vpop.xlane.xlu0 %161
    %163 = vadd.xlane.f32.xlu0 %v156
    %v164 = vpop.xlane.xlu0 %163
    %v165 = vmul.f32 %v158, 0.0078125
    %v166 = vmul.f32 %v160, 0.0078125
    %v167 = vmul.f32 %v162, 0.0078125
    %v168 = vmul.f32 %v164, 0.0078125
    %v169 = vmul.f32 %v149, %v149
    %v170 = vmul.f32 %v150, %v150
    %v171 = vmul.f32 %v151, %v151
    %v172 = vmul.f32 %v152, %v152
    %v173 = vsub.f32 %v165, %v169
    %v174 = vsub.f32 %v166, %v170
    %v175 = vsub.f32 %v167, %v171
    %v176 = vsub.f32 %v168, %v172
    %v177 = vmax.f32 %v173, 0.0
    %v178 = vmax.f32 %v174, 0.0
    %v179 = vmax.f32 %v175, 0.0
    %v180 = vmax.f32 %v176, 0.0
    %v181 = vadd.f32 %v177, 1e-05
    %v182 = vadd.f32 %v178, 1e-05
    %v183 = vadd.f32 %v179, 1e-05
    %v184 = vadd.f32 %v180, 1e-05
    %v185 = vrsqrt.pop %v181
    %v186 = vrsqrt.pop %v182
    %v187 = vrsqrt.pop %v183
    %v188 = vrsqrt.pop %v184
    %v189 = vld [vmem:[#allocation7] sm:$0x1]
    %v191 = vlaneseq
    %v192 = vshrl.u32 %v191, 7
    %v193 = vsub.s32 0, %v192
    %v194 = vrot.slane %v189, %v193
    %v196 = vmul.f32 %v194, %v185
    %v197 = vmul.f32 %v194, %v186
    %v198 = vmul.f32 %v194, %v187
    %v199 = vmul.f32 %v194, %v188
    %v200 = vld [vmem:[#allocation9] sm:$0x1]
    %v201 = vmul.f32 %v149, %v196
    %v202 = vmul.f32 %v150, %v197
    %v203 = vmul.f32 %v151, %v198
    %v204 = vmul.f32 %v152, %v199
    %v206 = vlaneseq
    %v207 = vshrl.u32 %v206, 7
    %v208 = vsub.s32 0, %v207
    %v209 = vrot.slane %v200, %v208
    %v211 = vsub.f32 %v209, %v201
    %v212 = vsub.f32 %v209, %v202
    %v213 = vsub.f32 %v209, %v203
    %v214 = vsub.f32 %v209, %v204
    %v215 = vmul.f32 %v137, %v196
    %v216 = vmul.f32 %v138, %v197
    %v217 = vmul.f32 %v139, %v198
    %v218 = vmul.f32 %v140, %v199
    %v219 = vadd.f32 %v215, %v211
    %v220 = vadd.f32 %v216, %v212
    %v221 = vadd.f32 %v217, %v213
    %v222 = vadd.f32 %v218, %v214
    %v223 = vld [vmem:[#allocation10] sm:$0xff]
    %v224 = vld [vmem:[#allocation10 + $0x8] sm:$0xff]
    %v225 = vld [vmem:[#allocation10 + $0x10] sm:$0xff]
    %v226 = vld [vmem:[#allocation10 + $0x18] sm:$0xff]
    %v227 = vld [vmem:[#allocation10 + $0x20] sm:$0xff]
    %v228 = vld [vmem:[#allocation10 + $0x28] sm:$0xff]
    %v229 = vld [vmem:[#allocation10 + $0x30] sm:$0xff]
    %v230 = vld [vmem:[#allocation10 + $0x38] sm:$0xff]
    %v231 = vld [vmem:[#allocation10 + $0x40] sm:$0xff]
    %v232 = vld [vmem:[#allocation10 + $0x48] sm:$0xff]
    %v233 = vld [vmem:[#allocation10 + $0x50] sm:$0xff]
    %v234 = vld [vmem:[#allocation10 + $0x58] sm:$0xff]
    %v235 = vld [vmem:[#allocation10 + $0x60] sm:$0xff]
    %v236 = vld [vmem:[#allocation10 + $0x68] sm:$0xff]
    %v237 = vld [vmem:[#allocation10 + $0x70] sm:$0xff]
    %v238 = vld [vmem:[#allocation10 + $0x78] sm:$0xff]
    %v239 = vld [vmem:[#allocation12] sm:$0x1]
    %v241 = vlaneseq
    %v242 = vshrl.u32 %v241, 7
    %v243 = vsub.s32 0, %v242
    %v244 = vrot.slane %v239, %v243
    %246 = vmatprep.subr.mxu0 0.0
    %247 = vmatpush1.msra.mxu0 %v223
    %248 = vmatprep.subr.mxu0 0.0
    %249 = vmatpush1.msra.mxu0 %v224
    %250 = vmatprep.subr.mxu0 0.0
    %251 = vmatpush1.msra.mxu0 %v225
    %252 = vmatprep.subr.mxu0 0.0
    %253 = vmatpush1.msra.mxu0 %v226
    %254 = vmatprep.subr.mxu0 0.0
    %255 = vmatpush1.msra.mxu0 %v227
    %256 = vmatprep.subr.mxu0 0.0
    %257 = vmatpush1.msra.mxu0 %v228
    %258 = vmatprep.subr.mxu0 0.0
    %259 = vmatpush1.msra.mxu0 %v229
    %260 = vmatprep.subr.mxu0 0.0
    %261 = vmatpush1.msra.mxu0 %v230
    %262 = vmatprep.subr.mxu0 0.0
    %263 = vmatpush1.msra.mxu0 %v231
    %264 = vmatprep.subr.mxu0 0.0
    %265 = vmatpush1.msra.mxu0 %v232
    %266 = vmatprep.subr.mxu0 0.0
    %267 = vmatpush1.msra.mxu0 %v233
    %268 = vmatprep.subr.mxu0 0.0
    %269 = vmatpush1.msra.mxu0 %v234
    %270 = vmatprep.subr.mxu0 0.0
    %271 = vmatpush1.msra.mxu0 %v235
    %272 = vmatprep.subr.mxu0 0.0
    %273 = vmatpush1.msra.mxu0 %v236
    %274 = vmatprep.subr.mxu0 0.0
    %275 = vmatpush1.msra.mxu0 %v237
    %276 = vmatprep.subr.mxu0 0.0
    %277 = vmatpush1.msra.mxu0 %v238
    %278 = vmatprep.subr.mxu0 0.0
    %279 = vmatpush1.msra.mxu0 0.0
    %280 = vmatprep.subr.mxu0 0.0
    %281 = vmatpush1.msra.mxu0 0.0
    %282 = vmatprep.subr.mxu0 0.0
    %283 = vmatpush1.msra.mxu0 0.0
    %284 = vmatprep.subr.mxu0 0.0
    %285 = vmatpush1.msra.mxu0 0.0
    %286 = vmatprep.subr.mxu0 0.0
    %287 = vmatpush1.msra.mxu0 0.0
    %288 = vmatprep.subr.mxu0 0.0
    %289 = vmatpush1.msra.mxu0 0.0
    %290 = vmatprep.subr.mxu0 0.0
    %291 = vmatpush1.msra.mxu0 0.0
    %292 = vmatprep.subr.mxu0 0.0
    %293 = vmatpush1.msra.mxu0 0.0
    %294 = vmatprep.subr.mxu0 0.0
    %295 = vmatpush1.msra.mxu0 0.0
    %296 = vmatprep.subr.mxu0 0.0
    %297 = vmatpush1.msra.mxu0 0.0
    %298 = vmatprep.subr.mxu0 0.0
    %299 = vmatpush1.msra.mxu0 0.0
    %300 = vmatprep.subr.mxu0 0.0
    %301 = vmatpush1.msra.mxu0 0.0
    %302 = vmatprep.subr.mxu0 0.0
    %303 = vmatpush1.msra.mxu0 0.0
    %304 = vmatprep.subr.mxu0 0.0
    %305 = vmatpush1.msra.mxu0 0.0
    %306 = vmatprep.subr.mxu0 0.0
    %307 = vmatpush1.msra.mxu0 0.0
    %308 = vmatprep.subr.mxu0 0.0
    %309 = vmatpush1.msra.mxu0 0.0
    %310 = vmatprep.mubr.f32.mxu0 0.0
    %311 = vmatmul.mubr.f32.gmra.mrb[0].mxu0 %v219
    %v312 = vpop.f32.mrb[0].mxu0
    %v313 = vadd.f32 %v244, %v312
    %v314 = vpop.f32.mrb[0].mxu0
    %315 = vmatprep.mubr.f32.mxu0 0.0
    %316 = vmatmul.mubr.f32.gmra.mrb[0].mxu0 %v220
    %v317 = vpop.f32.mrb[0].mxu0
    %v318 = vadd.f32 %v244, %v317
    %v319 = vpop.f32.mrb[0].mxu0
    %320 = vmatprep.mubr.f32.mxu0 0.0
    %321 = vmatmul.mubr.f32.gmra.mrb[0].mxu0 %v221
    %v322 = vpop.f32.mrb[0].mxu0
    %v323 = vadd.f32 %v244, %v322
    %v324 = vpop.f32.mrb[0].mxu0
    %325 = vmatprep.mubr.f32.mxu0 0.0
    %326 = vmatmul.mubr.f32.gmra.mrb[0].mxu0 %v222
    %v327 = vpop.f32.mrb[0].mxu0
    %v328 = vadd.f32 %v244, %v327
    %v329 = vpop.f32.mrb[0].mxu0
    %330 = vdwg.mxu0
    %v331 = vmax.f32 %v313, 0.0
    %v332 = vmax.f32 %v318, 0.0
    %v333 = vmax.f32 %v323, 0.0
    %v334 = vmax.f32 %v328, 0.0
    %v335 = vld [vmem:[#allocation13] sm:$0xff]
    %v336 = vld [vmem:[#allocation13 + $0x8] sm:$0xff]
    %v337 = vld [vmem:[#allocation13 + $0x10] sm:$0xff]
    %v338 = vld [vmem:[#allocation13 + $0x18] sm:$0xff]
    %v339 = vld [vmem:[#allocation13 + $0x20] sm:$0xff]
    %v340 = vld [vmem:[#allocation13 + $0x28] sm:$0xff]
    %v341 = vld [vmem:[#allocation13 + $0x30] sm:$0xff]
    %v342 = vld [vmem:[#allocation13 + $0x38] sm:$0xff]
    %v343 = vld [vmem:[#allocation13 + $0x40] sm:$0xff]
    %v344 = vld [vmem:[#allocation13 + $0x48] sm:$0xff]
    %v345 = vld [vmem:[#allocation13 + $0x50] sm:$0xff]
    %v346 = vld [vmem:[#allocation13 + $0x58] sm:$0xff]
    %v347 = vld [vmem:[#allocation13 + $0x60] sm:$0xff]
    %v348 = vld [vmem:[#allocation13 + $0x68] sm:$0xff]
    %v349 = vld [vmem:[#allocation13 + $0x70] sm:$0xff]
    %v350 = vld [vmem:[#allocation13 + $0x78] sm:$0xff]
    %v351 = vld [vmem:[#allocation15] sm:$0x1]
    %v353 = vlaneseq
    %v354 = vshrl.u32 %v353, 7
    %v355 = vsub.s32 0, %v354
    %v356 = vrot.slane %v351, %v355
    %358 = vmatprep.subr.mxu0 0.0
    %359 = vmatpush1.msra.mxu0 %v335
    %360 = vmatprep.subr.mxu0 0.0
    %361 = vmatpush1.msra.mxu0 %v336
    %362 = vmatprep.subr.mxu0 0.0
    %363 = vmatpush1.msra.mxu0 %v337
    %364 = vmatprep.subr.mxu0 0.0
    %365 = vmatpush1.msra.mxu0 %v338
    %366 = vmatprep.subr.mxu0 0.0
    %367 = vmatpush1.msra.mxu0 %v339
    %368 = vmatprep.subr.mxu0 0.0
    %369 = vmatpush1.msra.mxu0 %v340
    %370 = vmatprep.subr.mxu0 0.0
    %371 = vmatpush1.msra.mxu0 %v341
    %372 = vmatprep.subr.mxu0 0.0
    %373 = vmatpush1.msra.mxu0 %v342
    %374 = vmatprep.subr.mxu0 0.0
    %375 = vmatpush1.msra.mxu0 %v343
    %376 = vmatprep.subr.mxu0 0.0
    %377 = vmatpush1.msra.mxu0 %v344
    %378 = vmatprep.subr.mxu0 0.0
    %379 = vmatpush1.msra.mxu0 %v345
    %380 = vmatprep.subr.mxu0 0.0
    %381 = vmatpush1.msra.mxu0 %v346
    %382 = vmatprep.subr.mxu0 0.0
    %383 = vmatpush1.msra.mxu0 %v347
    %384 = vmatprep.subr.mxu0 0.0
    %385 = vmatpush1.msra.mxu0 %v348
    %386 = vmatprep.subr.mxu0 0.0
    %387 = vmatpush1.msra.mxu0 %v349
    %388 = vmatprep.subr.mxu0 0.0
    %389 = vmatpush1.msra.mxu0 %v350
    %390 = vmatprep.subr.mxu0 0.0
    %391 = vmatpush1.msra.mxu0 0.0
    %392 = vmatprep.subr.mxu0 0.0
    %393 = vmatpush1.msra.mxu0 0.0
    %394 = vmatprep.subr.mxu0 0.0
    %395 = vmatpush1.msra.mxu0 0.0
    %396 = vmatprep.subr.mxu0 0.0
    %397 = vmatpush1.msra.mxu0 0.0
    %398 = vmatprep.subr.mxu0 0.0
    %399 = vmatpush1.msra.mxu0 0.0
    %400 = vmatprep.subr.mxu0 0.0
    %401 = vmatpush1.msra.mxu0 0.0
    %402 = vmatprep.subr.mxu0 0.0
    %403 = vmatpush1.msra.mxu0 0.0
    %404 = vmatprep.subr.mxu0 0.0
    %405 = vmatpush1.msra.mxu0 0.0
    %406 = vmatprep.subr.mxu0 0.0
    %407 = vmatpush1.msra.mxu0 0.0
    %408 = vmatprep.subr.mxu0 0.0
    %409 = vmatpush1.msra.mxu0 0.0
    %410 = vmatprep.subr.mxu0 0.0
    %411 = vmatpush1.msra.mxu0 0.0
    %412 = vmatprep.subr.mxu0 0.0
    %413 = vmatpush1.msra.mxu0 0.0
    %414 = vmatprep.subr.mxu0 0.0
    %415 = vmatpush1.msra.mxu0 0.0
    %416 = vmatprep.subr.mxu0 0.0
    %417 = vmatpush1.msra.mxu0 0.0
    %418 = vmatprep.subr.mxu0 0.0
    %419 = vmatpush1.msra.mxu0 0.0
    %420 = vmatprep.subr.mxu0 0.0
    %421 = vmatpush1.msra.mxu0 0.0
    %422 = vmatprep.mubr.f32.mxu0 0.0
    %423 = vmatmul.mubr.f32.gmra.mrb[0].mxu0 %v331
    %v424 = vpop.f32.mrb[0].mxu0
    %v425 = vadd.f32 %v356, %v424
    %v426 = vpop.f32.mrb[0].mxu0
    %427 = vmatprep.mubr.f32.mxu0 0.0
    %428 = vmatmul.mubr.f32.gmra.mrb[0].mxu0 %v332
    %v429 = vpop.f32.mrb[0].mxu0
    %v430 = vadd.f32 %v356, %v429
    %v431 = vpop.f32.mrb[0].mxu0
    %432 = vmatprep.mubr.f32.mxu0 0.0
    %433 = vmatmul.mubr.f32.gmra.mrb[0].mxu0 %v333
    %v434 = vpop.f32.mrb[0].mxu0
    %v435 = vadd.f32 %v356, %v434
    %v436 = vpop.f32.mrb[0].mxu0
    %437 = vmatprep.mubr.f32.mxu0 0.0
    %438 = vmatmul.mubr.f32.gmra.mrb[0].mxu0 %v334
    %v439 = vpop.f32.mrb[0].mxu0
    %v440 = vadd.f32 %v356, %v439
    %v441 = vpop.f32.mrb[0].mxu0
    %442 = vdwg.mxu0
    %v443 = vadd.f32 %v425, %v137
    %v444 = vadd.f32 %v430, %v138
    %v445 = vadd.f32 %v435, %v139
    %v446 = vadd.f32 %v440, %v140
    %447 = vst [vmem:[#allocation16] sm:$0xff] %v443
    %448 = vst [vmem:[#allocation16 + $0x8] sm:$0xff] %v444
    %449 = vst [vmem:[#allocation16 + $0x10] sm:$0xff] %v445
    %450 = vst [vmem:[#allocation16 + $0x18] sm:$0xff] %v446
    // Predicated region
    $region58: #{tpu_custom_call.1} parent=1 // pred_check
      _
    $region59: #{tpu_custom_call.1} parent=1 // pred_check_branch
      %452 = sbr.rel (0) target = $region61
    $region60: #{tpu_custom_call.1} parent=1 // pred_region
      %s454 = ssub.s32 512, 512
      %455 = vsyncadd [#allocation6], %s454
      %s456 = sshll.u32 [#allocation16], 4
      %s457 = int_to_ptr.vmem [resolvable:$true] %s456
      %462 = dma.vmem_to_hbm [thread:$0]  %s457, 512, %s8, [#allocation6], 128, 128, 8
    $region61: #{tpu_custom_call.1} parent=1 // pred_fallthru
      _
    // Predicated region
    $region62: #{tpu_custom_call.1} parent=1 // pred_check
      _
    $region63: #{tpu_custom_call.1} parent=1 // pred_check_branch
      %464 = sbr.rel (0) target = $region65
    $region64: #{tpu_custom_call.1} parent=1 // pred_region
      %465 = dma.done [#allocation6], 512
    $region65: #{tpu_custom_call.1} parent=1 // pred_fallthru
      _
    %466 = vsyncpa [#allocation5], 1
    %467 = vsyncpa [#allocation8], 1
    %468 = vsyncpa [#allocation11], 1
    %469 = vsyncpa [#allocation14], 1
    %470 = vsyncpa [#allocation6], 1

</llo_original>
